<compile_context>
chip_gen: v7x
topology: tpu7x:2x2x1
jax: 0.10.0
libtpu: 0.0.40
codegen_flags: <defaults>
</compile_context>

<pallas_src>
import functools
from typing import NamedTuple

import jax
import jax.numpy as jnp
from jax.experimental import pallas as pl
from jax.experimental.pallas import tpu as pltpu


def _round_up(x, m):
    return (x + m - 1) // m * m


def _cdiv(a, b):
    return -(-a // b)


# ---------------------------------------------------------------------------
# Chip-generation-aware sizing.
# ---------------------------------------------------------------------------
def _chip_config():
    vmem = None
    try:
        info = pltpu.get_tpu_info()
        for name in ("vmem_capacity_bytes", "vmem_size_bytes", "vmem_bytes"):
            v = getattr(info, name, None)
            if v:
                vmem = int(v)
                break
    except Exception:
        vmem = None
    kind = ""
    try:
        kind = jax.devices()[0].device_kind.lower()
    except Exception:
        kind = ""
    if vmem is None:
        # Conservative fallback: assume the smallest (v7x-like) VMEM unless the
        # device kind says otherwise.
        vmem = (128 << 20) if ("v5" in kind or "v6" in kind) else (64 << 20)

    if vmem <= (64 << 20) or "7" in kind:
        # v7x-like: 64 MiB VMEM per TC, 2 TensorCores, 2x256x256 MXU.
        return dict(mxu_align=256, num_tc=2, token_tile=256,
                    weight_budget=8 << 20,
                    vmem_cap=min(max(vmem - (8 << 20), 16 << 20), 52 << 20))
    if "v6" in kind:
        # v6e: 128 MiB VMEM, 1 TC, 2x256x256 MXU, ~1.4 TB/s HBM.
        return dict(mxu_align=256, num_tc=1, token_tile=512,
                    weight_budget=24 << 20,
                    vmem_cap=min(vmem - (16 << 20), 100 << 20))
    # v5e (or other 128 MiB chip): 4x128x128 MXU, slowest HBM -> big tiles.
    return dict(mxu_align=128, num_tc=1, token_tile=512,
                weight_budget=24 << 20,
                vmem_cap=min(vmem - (16 << 20), 100 << 20))


class FFNMeta(NamedTuple):
    d_model: int
    d_hidden: int
    d_out: int
    d_hidden_p: int
    d_out_p: int
    th: int


# ---------------------------------------------------------------------------
# One-time parameter preparation (padding / bf16 cast hoisted out of forward).
# ---------------------------------------------------------------------------
def prepare_ffn_params(w1, b1, w2, b2, *, hidden_tile=None, compute_dtype=None,
                       chip=None):
    """Pad / cast the FFN parameters once.

    w1: [d_model, d_hidden], b1: [d_hidden], w2: [d_hidden, d_out], b2: [d_out]
    (PyTorch nn.Linear weights stored transposed).
    Returns ((w1_p, b1_p, w2_p, b2_p), FFNMeta).
    """
    cfg = chip or _chip_config()
    d_model, d_hidden = w1.shape
    d_out = w2.shape[1]

    if compute_dtype is not None:
        w1 = w1.astype(compute_dtype)
        w2 = w2.astype(compute_dtype)
    w_itemsize = jnp.dtype(w1.dtype).itemsize

    align = cfg["mxu_align"]
    # Lane-dense output padding; only widen to the MXU width if d_out > 128.
    d_out_p = _round_up(d_out, align if d_out > 128 else 128)

    # Hidden chunk: sized from a per-generation weight-chunk VMEM budget, then
    # snapped to a near-divisor of d_hidden so padding stays minimal.
    if hidden_tile is not None:
        th = max(128, _round_up(hidden_tile, 128))
        th = min(th, _round_up(d_hidden, 128))
        d_hidden_p = _round_up(d_hidden, th)
    else:
        d_hidden_a = _round_up(d_hidden, align)
        per_col = (d_model + d_out_p) * w_itemsize
        th_budget = max(align,
                        cfg["weight_budget"] // max(per_col, 1) // align * align)
        if th_budget >= d_hidden_a:
            th = d_hidden_a
            d_hidden_p = d_hidden_a
        else:
            n_chunks = _cdiv(d_hidden_a, th_budget)
            th = _round_up(_cdiv(d_hidden_a, n_chunks), align)
            d_hidden_p = n_chunks * th

    if d_hidden_p != d_hidden:
        w1 = jnp.pad(w1, ((0, 0), (0, d_hidden_p - d_hidden)))
        b1 = jnp.pad(b1, (0, d_hidden_p - d_hidden))
        w2 = jnp.pad(w2, ((0, d_hidden_p - d_hidden), (0, 0)))
    if d_out_p != d_out:
        w2 = jnp.pad(w2, ((0, 0), (0, d_out_p - d_out)))
        b2 = jnp.pad(b2, (0, d_out_p - d_out))

    n_chunks = d_hidden_p // th
    b1_p = b1.reshape(n_chunks, th)       # row k = bias chunk for hidden chunk k
    b2_p = b2.reshape(1, d_out_p)

    meta = FFNMeta(d_model=d_model, d_hidden=d_hidden, d_out=d_out,
                   d_hidden_p=d_hidden_p, d_out_p=d_out_p, th=th)
    return (w1, b1_p, w2, b2_p), meta


# ---------------------------------------------------------------------------
# Kernels.
# ---------------------------------------------------------------------------
def _ffn_kernel_single(x_ref, w1_ref, b1_ref, w2_ref, b2_ref, o_ref):
    # Whole hidden dim in one chunk: no accumulator, write o_ref directly.
    h = jnp.dot(x_ref[...], w1_ref[...], preferred_element_type=jnp.float32)
    h = jnp.maximum(h + b1_ref[...].astype(jnp.float32), 0.0)
    # Dropout: identity (eval-mode semantics).
    y = jnp.dot(h.astype(w2_ref.dtype), w2_ref[...],
                preferred_element_type=jnp.float32)
    o_ref[...] = (y + b2_ref[...].astype(jnp.float32)).astype(o_ref.dtype)


def _ffn_kernel_multi(x_ref, w1_ref, b1_ref, w2_ref, b2_ref, o_ref, acc_ref):
    # Grid: (token tiles "parallel", hidden chunks "arbitrary" / reduction).
    # x_ref:  (TN, d_model)       token tile          (constant over k)
    # w1_ref: (d_model, TH)       hidden chunk of W1
    # b1_ref: (n_chunks, TH)      full b1, resident   (constant)
    # w2_ref: (TH, d_out_p)       hidden chunk of W2
    # b2_ref: (1, d_out_p)        full b2             (constant)
    # o_ref:  (TN, d_out_p)       output tile         (constant over k)
    # acc_ref:(TN, d_out_p) f32   accumulator scratch
    k = pl.program_id(1)

    h = jnp.dot(x_ref[...], w1_ref[...], preferred_element_type=jnp.float32)
    b1k = b1_ref[pl.ds(k, 1), :].astype(jnp.float32)        # (1, TH) bias chunk
    h = jnp.maximum(h + b1k, 0.0)
    # Dropout: identity (eval-mode semantics).
    part = jnp.dot(h.astype(w2_ref.dtype), w2_ref[...],
                   preferred_element_type=jnp.float32)

    @pl.when(k == 0)
    def _first():                       # write, don't zero-init + RMW
        acc_ref[...] = part

    @pl.when(k > 0)
    def _accumulate():
        acc_ref[...] += part

    @pl.when(k == pl.num_programs(1) - 1)
    def _finalize():
        o_ref[...] = (acc_ref[...]
                      + b2_ref[...].astype(jnp.float32)).astype(o_ref.dtype)


# ---------------------------------------------------------------------------
# Forward with pre-padded parameters.
# ---------------------------------------------------------------------------
def ffn_forward(x, w1_p, b1_p, w2_p, b2_p, *, meta, token_tile=None, chip=None):
    cfg = chip or _chip_config()
    d_model, d_hidden_p, d_out_p, th = (meta.d_model, meta.d_hidden_p,
                                        meta.d_out_p, meta.th)
    lead_shape = x.shape[:-1]
    out_dtype = x.dtype

    x2d = x.reshape(-1, d_model)
    if x2d.dtype != w1_p.dtype:          # bf16 (etc.) compute path
        x2d = x2d.astype(w1_p.dtype)
    x_itemsize = jnp.dtype(x2d.dtype).itemsize
    w_itemsize = jnp.dtype(w1_p.dtype).itemsize
    o_itemsize = jnp.dtype(out_dtype).itemsize

    # ---- balanced token tiling (+ 2-TensorCore split on v7x) ---------------
    n = x2d.shape[0]
    sublane = {4: 8, 2: 16, 1: 32}.get(x_itemsize, 8)
    tt = cfg["token_tile"] if token_tile is None else token_tile
    tt = max(sublane, _round_up(tt, sublane))
    num_tiles = max(1, _cdiv(n, tt))
    if cfg["num_tc"] > 1 and num_tiles < cfg["num_tc"] and n > sublane:
        num_tiles = cfg["num_tc"]        # keep both TensorCores busy
    tn = max(sublane, _round_up(_cdiv(n, num_tiles), sublane))
    num_tiles = _cdiv(n, tn)
    n_pad = num_tiles * tn
    if n_pad != n:                       # pad only when ragged
        x2d = jnp.pad(x2d, ((0, n_pad - n), (0, 0)))

    n_chunks = d_hidden_p // th
    single = (n_chunks == 1)

    # ---- VMEM limit (generation-aware cap, double-buffered estimate) -------
    resident = (2 * (tn * d_model * x_itemsize
                     + (d_model * th + th * d_out_p) * w_itemsize
                     + d_hidden_p * jnp.dtype(b1_p.dtype).itemsize
                     + d_out_p * jnp.dtype(b2_p.dtype).itemsize
                     + tn * d_out_p * o_itemsize)
                + tn * th * 4)                          # h intermediate (f32)
    if not single:
        resident += tn * d_out_p * 4                    # f32 accumulator scratch
    vmem_limit = int(min(cfg["vmem_cap"], max(32 << 20, 2 * resident)))
    vmem_limit = int(max(vmem_limit, resident + (2 << 20)))

    weight_bytes = ((d_model * d_hidden_p + d_hidden_p * d_out_p) * w_itemsize
                    + d_hidden_p * jnp.dtype(b1_p.dtype).itemsize
                    + d_out_p * jnp.dtype(b2_p.dtype).itemsize)
    cost = pl.CostEstimate(
        flops=2 * n_pad * d_model * d_hidden_p + 2 * n_pad * d_hidden_p * d_out_p,
        transcendentals=0,
        bytes_accessed=int(n_pad * d_model * x_itemsize
                           + num_tiles * weight_bytes   # re-streamed per token tile
                           + n_pad * d_out_p * o_itemsize),
    )

    if single:
        grid_spec = pltpu.PrefetchScalarGridSpec(
            num_scalar_prefetch=0,
            grid=(num_tiles,),
            in_specs=[
                pl.BlockSpec((tn, d_model), lambda i: (i, 0)),           # x tile
                pl.BlockSpec((d_model, d_hidden_p), lambda i: (0, 0)),   # W1
                pl.BlockSpec((1, d_hidden_p), lambda i: (0, 0)),         # b1
                pl.BlockSpec((d_hidden_p, d_out_p), lambda i: (0, 0)),   # W2
                pl.BlockSpec((1, d_out_p), lambda i: (0, 0)),            # b2
            ],
            out_specs=pl.BlockSpec((tn, d_out_p), lambda i: (i, 0)),
        )
        kernel = _ffn_kernel_single
        semantics = ("parallel",)
    else:
        grid_spec = pltpu.PrefetchScalarGridSpec(
            num_scalar_prefetch=0,
            grid=(num_tiles, n_chunks),
            in_specs=[
                pl.BlockSpec((tn, d_model), lambda i, k: (i, 0)),        # x tile
                pl.BlockSpec((d_model, th), lambda i, k: (0, k)),        # W1 chunk
                pl.BlockSpec((n_chunks, th), lambda i, k: (0, 0)),       # b1 (all)
                pl.BlockSpec((th, d_out_p), lambda i, k: (k, 0)),        # W2 chunk
                pl.BlockSpec((1, d_out_p), lambda i, k: (0, 0)),         # b2
            ],
            out_specs=pl.BlockSpec((tn, d_out_p), lambda i, k: (i, 0)),
            scratch_shapes=[pltpu.VMEM((tn, d_out_p), jnp.float32)],
        )
        kernel = _ffn_kernel_multi
        semantics = ("parallel", "arbitrary")

    out = pl.pallas_call(
        kernel,
        out_shape=jax.ShapeDtypeStruct((n_pad, d_out_p), out_dtype),
        grid_spec=grid_spec,
        compiler_params=pltpu.CompilerParams(
            dimension_semantics=semantics,
            vmem_limit_bytes=vmem_limit,
        ),
        cost_estimate=cost,
    )(x2d, w1_p, b1_p, w2_p, b2_p)

    out = out[:n, :meta.d_out].reshape(*lead_shape, meta.d_out)
    # Reproduce the trailing .squeeze() of the PyTorch forward.
    return jnp.squeeze(out)


def positionwise_ffn(x, w1, b1, w2, b2, *, token_tile=None, hidden_tile=None,
                     compute_dtype=None):
    """squeeze(w2 @ relu(w1 @ x + b1) + b2), fused in one Pallas kernel.

    Convenience path; for repeated calls, hoist prepare_ffn_params() out of
    the jitted forward and call ffn_forward() directly.
    """
    chip = _chip_config()
    params, meta = prepare_ffn_params(w1, b1, w2, b2, hidden_tile=hidden_tile,
                                      compute_dtype=compute_dtype, chip=chip)
    return ffn_forward(x, *params, meta=meta, token_tile=token_tile, chip=chip)


def reference_ffn(x, w1, b1, w2, b2):
    h = jnp.maximum(jnp.einsum("...i,ij->...j", x, w1) + b1, 0.0)
    y = jnp.einsum("...i,ij->...j", h, w2) + b2
    return jnp.squeeze(y)


if __name__ == "__main__":
    # Shapes implied by the module: x [batch, seq, d_model]
    batch, seq = 2, 24
    d_model, d_hidden, d_out = 64, 256, 48

    key = jax.random.PRNGKey(0)
    kx, kw1, kb1, kw2, kb2 = jax.random.split(key, 5)

    x = jax.random.normal(kx, (batch, seq, d_model), dtype=jnp.float32)
    # PyTorch nn.Linear: w_1.weight [d_hidden, d_model] -> stored transposed
    # here as [d_model, d_hidden]; same for w_2.
    w1 = jax.random.normal(kw1, (d_model, d_hidden), dtype=jnp.float32) * 0.1
    b1 = jax.random.normal(kb1, (d_hidden,), dtype=jnp.float32) * 0.1
    w2 = jax.random.normal(kw2, (d_hidden, d_out), dtype=jnp.float32) * 0.1
    b2 = jax.random.normal(kb2, (d_out,), dtype=jnp.float32) * 0.1

    ref = reference_ffn(x, w1, b1, w2, b2)

    # 1) Convenience path: auto tiling, single-chunk fast path at this size.
    out1 = jax.jit(positionwise_ffn)(x, w1, b1, w2, b2)
    jax.block_until_ready(out1)
    assert out1.shape == ref.shape, (out1.shape, ref.shape)
    assert jnp.allclose(out1, ref, atol=1e-4, rtol=1e-4), "mismatch (default)"

    # 2) Prepared-params path (padding hoisted out of the jitted forward) with
    #    a forced multi-step grid: 3 token tiles x 2 hidden chunks exercises
    #    the accumulator / reduction-axis path.
    chip = _chip_config()
    params, meta = prepare_ffn_params(w1, b1, w2, b2, hidden_tile=128, chip=chip)
    fwd = jax.jit(functools.partial(ffn_forward, meta=meta, token_tile=16,
                                    chip=chip))
    out2 = fwd(x, *params)
    jax.block_until_ready(out2)
    assert out2.shape == ref.shape, (out2.shape, ref.shape)
    assert jnp.allclose(out2, ref, atol=1e-4, rtol=1e-4), "mismatch (tiled)"

    # 3) Optional bf16-compute path (MXU-native feeds, f32 accumulation).
    out3 = jax.jit(functools.partial(positionwise_ffn,
                                     compute_dtype=jnp.bfloat16))(x, w1, b1, w2, b2)
    jax.block_until_ready(out3)
    assert out3.shape == ref.shape, (out3.shape, ref.shape)
    assert jnp.allclose(out3, ref, atol=1e-1, rtol=5e-2), "mismatch (bf16)"

    print("KERNEL_OK")
</pallas_src>

<mosaic_0001>
module attributes {stable_mosaic.version = 11 : i64} {
  func.func @_ffn_kernel_single(%arg0: i32, %arg1: memref<24x64xf32, #tpu.memory_space<vmem>>, %arg2: memref<64x256xf32, #tpu.memory_space<vmem>>, %arg3: memref<1x256xf32, #tpu.memory_space<vmem>>, %arg4: memref<256x128xf32, #tpu.memory_space<vmem>>, %arg5: memref<1x128xf32, #tpu.memory_space<vmem>>, %arg6: memref<24x128xf32, #tpu.memory_space<vmem>>) attributes {dimension_semantics = [#tpu.dimension_semantics<parallel>], iteration_bounds = array<i64: 2>, scalar_prefetch = 0 : i64, scratch_operands = 0 : i64, tpu.core_type = #tpu.core_type<tc>, window_params = [{transform_indices = @transform_0, window_bounds = array<i64: 24, 64>}, {pipeline_mode = #tpu.pipeline_mode<synchronous>, transform_indices = @transform_1, window_bounds = array<i64: 64, 256>}, {pipeline_mode = #tpu.pipeline_mode<synchronous>, transform_indices = @transform_2, window_bounds = array<i64: 1, 256>}, {pipeline_mode = #tpu.pipeline_mode<synchronous>, transform_indices = @transform_3, window_bounds = array<i64: 256, 128>}, {pipeline_mode = #tpu.pipeline_mode<synchronous>, transform_indices = @transform_4, window_bounds = array<i64: 1, 128>}, {transform_indices = @transform_5, window_bounds = array<i64: 24, 128>}]} {
    %c0 = arith.constant 0 : index
    %c0_0 = arith.constant 0 : index
    %0 = vector.load %arg1[%c0, %c0_0] : memref<24x64xf32, #tpu.memory_space<vmem>>, vector<24x64xf32>
    %c0_1 = arith.constant 0 : index
    %c0_2 = arith.constant 0 : index
    %1 = vector.load %arg2[%c0_1, %c0_2] : memref<64x256xf32, #tpu.memory_space<vmem>>, vector<64x256xf32>
    %cst = arith.constant dense<0.000000e+00> : vector<24x256xf32>
    %2 = tpu.matmul %0, %1, %cst {dimension_numbers = #tpu.dot_dimension_numbers<[1], [0], [0], [1], [0, 0, 1, 1], [], []>} : vector<24x64xf32>, vector<64x256xf32>, vector<24x256xf32> -> vector<24x256xf32>
    %c0_3 = arith.constant 0 : index
    %c0_4 = arith.constant 0 : index
    %3 = vector.load %arg3[%c0_3, %c0_4] : memref<1x256xf32, #tpu.memory_space<vmem>>, vector<1x256xf32>
    %4 = vector.broadcast %3 : vector<1x256xf32> to vector<24x256xf32>
    %5 = arith.addf %2, %4 : vector<24x256xf32>
    %cst_5 = arith.constant 0.000000e+00 : f32
    %6 = vector.broadcast %cst_5 : f32 to vector<24x256xf32>
    %7 = arith.maximumf %5, %6 : vector<24x256xf32>
    %c0_6 = arith.constant 0 : index
    %c0_7 = arith.constant 0 : index
    %8 = vector.load %arg4[%c0_6, %c0_7] : memref<256x128xf32, #tpu.memory_space<vmem>>, vector<256x128xf32>
    %cst_8 = arith.constant dense<0.000000e+00> : vector<24x128xf32>
    %9 = tpu.matmul %7, %8, %cst_8 {dimension_numbers = #tpu.dot_dimension_numbers<[1], [0], [0], [1], [0, 0, 1, 1], [], []>} : vector<24x256xf32>, vector<256x128xf32>, vector<24x128xf32> -> vector<24x128xf32>
    %c0_9 = arith.constant 0 : index
    %c0_10 = arith.constant 0 : index
    %10 = vector.load %arg5[%c0_9, %c0_10] : memref<1x128xf32, #tpu.memory_space<vmem>>, vector<1x128xf32>
    %11 = vector.broadcast %10 : vector<1x128xf32> to vector<24x128xf32>
    %12 = arith.addf %9, %11 : vector<24x128xf32>
    %c0_11 = arith.constant 0 : index
    %c0_12 = arith.constant 0 : index
    %13 = vector.load %arg6[%c0_11, %c0_12] : memref<24x128xf32, #tpu.memory_space<vmem>>, vector<24x128xf32>
    tpu.vector_store %arg6[%c0_11, %c0_12], %12 {strides = array<i32>} : memref<24x128xf32, #tpu.memory_space<vmem>>, vector<24x128xf32>,
    return
  }
  func.func @transform_0(%arg0: i32) -> (i32, i32) {
    %c0_i32 = arith.constant 0 : i32
    %c0_i32_0 = arith.constant 0 : i32
    return %arg0, %c0_i32 : i32, i32
  }
  func.func @transform_1(%arg0: i32) -> (i32, i32) {
    %c0_i32 = arith.constant 0 : i32
    %c0_i32_0 = arith.constant 0 : i32
    %c0_i32_1 = arith.constant 0 : i32
    return %c0_i32, %c0_i32_0 : i32, i32
  }
  func.func @transform_2(%arg0: i32) -> (i32, i32) {
    %c0_i32 = arith.constant 0 : i32
    %c0_i32_0 = arith.constant 0 : i32
    %c0_i32_1 = arith.constant 0 : i32
    return %c0_i32, %c0_i32_0 : i32, i32
  }
  func.func @transform_3(%arg0: i32) -> (i32, i32) {
    %c0_i32 = arith.constant 0 : i32
    %c0_i32_0 = arith.constant 0 : i32
    %c0_i32_1 = arith.constant 0 : i32
    return %c0_i32, %c0_i32_0 : i32, i32
  }
  func.func @transform_4(%arg0: i32) -> (i32, i32) {
    %c0_i32 = arith.constant 0 : i32
    %c0_i32_0 = arith.constant 0 : i32
    %c0_i32_1 = arith.constant 0 : i32
    return %c0_i32, %c0_i32_0 : i32, i32
  }
  func.func @transform_5(%arg0: i32) -> (i32, i32) {
    %c0_i32 = arith.constant 0 : i32
    %c0_i32_0 = arith.constant 0 : i32
    return %arg0, %c0_i32 : i32, i32
  }
}

</mosaic_0001>

<llo_original>
// kernel: positionwise_ffn.1
$region0: #{positionwise_ffn.1}
  #allocation0 [shape = 'u32[]', space=smem, size = 0x4, offset = 0x4, fixed_abs, tag = 'smem constant byte address 0x4 - core index']
  #allocation1 [shape = 'u32[144,128]{1,0:T(1,128)}', space=vmem, size = 0x12000, scoped, tag = 'internal scratch']
  %s0 = inlined_call_operand.vmem [shape: f32[48,64], index: 0, kind: input, shape index: {}]
  %s1 = inlined_call_operand.vmem [shape: f32[64,256], index: 1, kind: input, shape index: {}]
  %s2 = inlined_call_operand.vmem [shape: f32[1,256], index: 2, kind: input, shape index: {}]
  %s3 = inlined_call_operand.vmem [shape: f32[256,128], index: 3, kind: input, shape index: {}]
  %s4 = inlined_call_operand.vmem [shape: f32[1,128], index: 4, kind: input, shape index: {}]
  %s5 = inlined_call_operand.hbm [shape: f32[48,128], index: 5, kind: output, shape index: {}]
  %s6 = sld [smem:[#allocation0]]
  $region53: #{positionwise_ffn.1} parent=0
    _
  %s8 = ssub.s32 1, %s6
  %s9 = scalar_select 0, %s8, %s6
  $region1: #{positionwise_ffn.1} parent=0
    #allocation2 [shape = 'u8[24576]{0}', space=vmem, size = 0x6000, scoped, tag = 'output window, operand 0']
    #allocation3 [shape = 's32[2]{0}', space=sflag, size = 0x8, scoped, tag = 'scoped memory for positionwise_ffn.1']
    %10 = vsyncpa [#allocation3], 0
    %s11 = scalar_lea.sflag [#allocation3], 1
    %12 = vsyncpa %s11, 0
    loop: start=0, step=1, limit=4
    $region2: #{positionwise_ffn.1} parent=1 // loop_pre_header
      _
    $region3: #{positionwise_ffn.1} parent=1 // loop_header
      %s14 = sphi 0, %s18
      %p15 = scmp.ge.s32.totalorder %s14, 4
      %s24 = sphi 0, %s26
      %s27 = sphi 0, %s24
      %s28 = sphi 0, %s27
      %s44 = sphi 0, %s28
      %s48 = sphi 0, %s48
      %s50 = sphi 0, %s48
      %s51 = sphi 0, %s50
      %s65 = sphi 0, %s51
      %s69 = sphi 0, %s69
      %s71 = sphi 0, %s69
      %s72 = sphi 0, %s71
      %s86 = sphi 0, %s72
      %s90 = sphi 0, %s90
      %s92 = sphi 0, %s90
      %s93 = sphi 0, %s92
      %s107 = sphi 0, %s93
      %s111 = sphi 0, %s111
      %s113 = sphi 0, %s111
      %s114 = sphi 0, %s113
      %s128 = sphi 0, %s114
      %s134 = sphi 0, %s136
      %s137 = sphi 0, %s134
      %s138 = sphi 0, %s137
      %s154 = sphi 0, %s138
    $region4: #{positionwise_ffn.1} parent=1 // loop_header_branch
      %17 = sbr.rel (%p15) target = $region8
    $region5: #{positionwise_ffn.1} parent=1 // loop_body
      %s19 = ssub.s32 %s14, 1
      %s20 = ssub.s32 %s14, 2
      %s21 = sadd.s32 %s14, 1
      %s22 = ssub.s32 %s14, %s21
      %p23 = scmp.eq.s32.totalorder %s22, 0
      %s25 = sadd.s32 %s24, 1
      %s26 = scalar_select %p23, %s24, %s25
      %p29 = pneg %p23
      %p30 = scmp.eq.s32.totalorder %s14, 1
      %p31 = por %p29, %p30
      %p32 = scmp.ne.s32.totalorder %s24, %s27
      %p33 = scmp.eq.s32.totalorder %s14, 0
      %p34 = por %p32, %p33
      %p35 = scmp.ne.s32.totalorder %s24, %s27
      %p36 = scmp.eq.s32.totalorder %s19, 1
      %p37 = por %p35, %p36
      %p38 = scmp.ne.s32.totalorder %s27, %s28
      %p39 = scmp.eq.s32.totalorder %s19, 0
      %p40 = por %p38, %p39
      %p41 = scmp.ne.s32.totalorder %s27, %s28
      %p42 = scmp.eq.s32.totalorder %s20, 1
      %p43 = por %p41, %p42
      %p45 = scmp.ne.s32.totalorder %s28, %s44
      %p46 = scmp.eq.s32.totalorder %s20, 0
      %p47 = por %p45, %p46
      %s49 = sadd.s32 %s48, 1
      %p52 = scmp.eq.s32.totalorder %s14, 1
      %p53 = scmp.ne.s32.totalorder %s48, %s50
      %p54 = scmp.eq.s32.totalorder %s14, 0
      %p55 = por %p53, %p54
      %p56 = scmp.ne.s32.totalorder %s48, %s50
      %p57 = scmp.eq.s32.totalorder %s19, 1
      %p58 = por %p56, %p57
      %p59 = scmp.ne.s32.totalorder %s50, %s51
      %p60 = scmp.eq.s32.totalorder %s19, 0
      %p61 = por %p59, %p60
      %p62 = scmp.ne.s32.totalorder %s50, %s51
      %p63 = scmp.eq.s32.totalorder %s20, 1
      %p64 = por %p62, %p63
      %p66 = scmp.ne.s32.totalorder %s51, %s65
      %p67 = scmp.eq.s32.totalorder %s20, 0
      %p68 = por %p66, %p67
      %s70 = sadd.s32 %s69, 1
      %p73 = scmp.eq.s32.totalorder %s14, 1
      %p74 = scmp.ne.s32.totalorder %s69, %s71
      %p75 = scmp.eq.s32.totalorder %s14, 0
      %p76 = por %p74, %p75
      %p77 = scmp.ne.s32.totalorder %s69, %s71
      %p78 = scmp.eq.s32.totalorder %s19, 1
      %p79 = por %p77, %p78
      %p80 = scmp.ne.s32.totalorder %s71, %s72
      %p81 = scmp.eq.s32.totalorder %s19, 0
      %p82 = por %p80, %p81
      %p83 = scmp.ne.s32.totalorder %s71, %s72
      %p84 = scmp.eq.s32.totalorder %s20, 1
      %p85 = por %p83, %p84
      %p87 = scmp.ne.s32.totalorder %s72, %s86
      %p88 = scmp.eq.s32.totalorder %s20, 0
      %p89 = por %p87, %p88
      %s91 = sadd.s32 %s90, 1
      %p94 = scmp.eq.s32.totalorder %s14, 1
      %p95 = scmp.ne.s32.totalorder %s90, %s92
      %p96 = scmp.eq.s32.totalorder %s14, 0
      %p97 = por %p95, %p96
      %p98 = scmp.ne.s32.totalorder %s90, %s92
      %p99 = scmp.eq.s32.totalorder %s19, 1
      %p100 = por %p98, %p99
      %p101 = scmp.ne.s32.totalorder %s92, %s93
      %p102 = scmp.eq.s32.totalorder %s19, 0
      %p103 = por %p101, %p102
      %p104 = scmp.ne.s32.totalorder %s92, %s93
      %p105 = scmp.eq.s32.totalorder %s20, 1
      %p106 = por %p104, %p105
      %p108 = scmp.ne.s32.totalorder %s93, %s107
      %p109 = scmp.eq.s32.totalorder %s20, 0
      %p110 = por %p108, %p109
      %s112 = sadd.s32 %s111, 1
      %p115 = scmp.eq.s32.totalorder %s14, 1
      %p116 = scmp.ne.s32.totalorder %s111, %s113
      %p117 = scmp.eq.s32.totalorder %s14, 0
      %p118 = por %p116, %p117
      %p119 = scmp.ne.s32.totalorder %s111, %s113
      %p120 = scmp.eq.s32.totalorder %s19, 1
      %p121 = por %p119, %p120
      %p122 = scmp.ne.s32.totalorder %s113, %s114
      %p123 = scmp.eq.s32.totalorder %s19, 0
      %p124 = por %p122, %p123
      %p125 = scmp.ne.s32.totalorder %s113, %s114
      %p126 = scmp.eq.s32.totalorder %s20, 1
      %p127 = por %p125, %p126
      %p129 = scmp.ne.s32.totalorder %s114, %s128
      %p130 = scmp.eq.s32.totalorder %s20, 0
      %p131 = por %p129, %p130
      %s132 = ssub.s32 %s14, %s21
      %p133 = scmp.eq.s32.totalorder %s132, 0
      %s135 = sadd.s32 %s134, 1
      %s136 = scalar_select %p133, %s134, %s135
      %p139 = pneg %p133
      %p140 = scmp.eq.s32.totalorder %s14, 1
      %p141 = por %p139, %p140
      %p142 = scmp.ne.s32.totalorder %s134, %s137
      %p143 = scmp.eq.s32.totalorder %s14, 0
      %p144 = por %p142, %p143
      %p145 = scmp.ne.s32.totalorder %s134, %s137
      %p146 = scmp.eq.s32.totalorder %s19, 1
      %p147 = por %p145, %p146
      %p148 = scmp.ne.s32.totalorder %s137, %s138
      %p149 = scmp.eq.s32.totalorder %s19, 0
      %p150 = por %p148, %p149
      %p151 = scmp.ne.s32.totalorder %s137, %s138
      %p152 = scmp.eq.s32.totalorder %s20, 1
      %p153 = por %p151, %p152
      %p155 = scmp.ne.s32.totalorder %s138, %s154
      %p156 = scmp.eq.s32.totalorder %s20, 0
      %p157 = por %p155, %p156
      %p158 = scmp.le.s32.totalorder 1, %s14
      %p159 = scmp.lt.s32.totalorder %s14, 3
      %p160 = pnand %p158, %p159
      %p161 = pneg %p160
      // Predicated region
      $region9: #{positionwise_ffn.1} parent=5 // pred_check
        _
      $region10: #{positionwise_ffn.1} parent=5 // pred_check_branch
        %163 = sbr.rel (%p160) target = $region12
      $region11: #{positionwise_ffn.1} parent=5 // pred_region
        %s164 = ssub.s32 %s14, 1
        // Predicated region
        $region13: #{positionwise_ffn.1} parent=11 // pred_check
          %p165 = pneg %p61
        $region14: #{positionwise_ffn.1} parent=11 // pred_check_branch
          %167 = sbr.rel (%p165) target = $region16
        $region15: #{positionwise_ffn.1} parent=11 // pred_region
          _
        $region16: #{positionwise_ffn.1} parent=11 // pred_fallthru
          _
        // Predicated region
        $region17: #{positionwise_ffn.1} parent=11 // pred_check
          %p168 = pneg %p82
        $region18: #{positionwise_ffn.1} parent=11 // pred_check_branch
          %170 = sbr.rel (%p168) target = $region20
        $region19: #{positionwise_ffn.1} parent=11 // pred_region
          _
        $region20: #{positionwise_ffn.1} parent=11 // pred_fallthru
          _
        // Predicated region
        $region21: #{positionwise_ffn.1} parent=11 // pred_check
          %p171 = pneg %p103
        $region22: #{positionwise_ffn.1} parent=11 // pred_check_branch
          %173 = sbr.rel (%p171) target = $region24
        $region23: #{positionwise_ffn.1} parent=11 // pred_region
          _
        $region24: #{positionwise_ffn.1} parent=11 // pred_fallthru
          _
        // Predicated region
        $region25: #{positionwise_ffn.1} parent=11 // pred_check
          %p174 = pneg %p124
        $region26: #{positionwise_ffn.1} parent=11 // pred_check_branch
          %176 = sbr.rel (%p174) target = $region28
        $region27: #{positionwise_ffn.1} parent=11 // pred_region
          _
        $region28: #{positionwise_ffn.1} parent=11 // pred_fallthru
          _
      $region12: #{positionwise_ffn.1} parent=5 // pred_fallthru
        _
      %p177 = scmp.lt.s32.totalorder %s14, 2
      // Predicated region
      $region29: #{positionwise_ffn.1} parent=5 // pred_check
        %p178 = pneg %p177
      $region30: #{positionwise_ffn.1} parent=5 // pred_check_branch
        %180 = sbr.rel (%p178) target = $region32
      $region31: #{positionwise_ffn.1} parent=5 // pred_region
        // Predicated region
        $region33: #{positionwise_ffn.1} parent=31 // pred_check
          %p181 = pneg %p34
        $region34: #{positionwise_ffn.1} parent=31 // pred_check_branch
          %183 = sbr.rel (%p181) target = $region36
        $region35: #{positionwise_ffn.1} parent=31 // pred_region
          %s184 = smul.u32 3, %s14
          %p185 = scmp.lt.s32.totalorder %s184, 5
          %s186 = scalar_select %p185, %s184, 5
          %s187 = smul.addr %s186, 8
          %s188 = scalar_lea.vmem %s0, %s187
          %s189 = smul.u32 3, %s14
        $region36: #{positionwise_ffn.1} parent=31 // pred_fallthru
          _
      $region32: #{positionwise_ffn.1} parent=5 // pred_fallthru
        _
      %p190 = scmp.le.s32.totalorder 1, %s14
      %p191 = scmp.lt.s32.totalorder %s14, 3
      %p192 = pnand %p190, %p191
      %p193 = pneg %p192
      // Predicated region
      $region37: #{positionwise_ffn.1} parent=5 // pred_check
        _
      $region38: #{positionwise_ffn.1} parent=5 // pred_check_branch
        %195 = sbr.rel (%p192) target = $region40
      $region39: #{positionwise_ffn.1} parent=5 // pred_region
        %s196 = ssub.s32 %s14, 1
        %s197 = smul.u32 3, %s19
        %p198 = scmp.lt.s32.totalorder %s197, 5
        %s199 = scalar_select %p198, %s197, 5
        %s200 = smul.addr %s199, 8
        %s201 = scalar_lea.vmem %s0, %s200
        %p202 = pneg %p40
        %p203 = pneg %p37
        %p204 = pneg %p61
        %p205 = pneg %p58
        %p206 = pneg %p82
        %p207 = pneg %p79
        %p208 = pneg %p103
        %p209 = pneg %p100
        %p210 = pneg %p124
        %p211 = pneg %p121
        %p212 = pneg %p150
        %p213 = pneg %p147
        %s214 = sand.u32 %s137, 1
        %s215 = scalar_lea.sflag [#allocation3], %s214
        %s216 = sand.u32 %s137, 1
        %s217 = smul.addr %s216, 24
        %s218 = scalar_lea.vmem [#allocation2], %s217
        %s219 = smul.u32 3, %s19
        %p220 = scmp.lt.s32.totalorder %s219, 5
        %s221 = scalar_select %p220, %s219, 5
        %s222 = smul.addr %s221, 8
        %s223 = scalar_lea.vmem %s0, %s222
        %s224 = smul.u32 3, %s19
        %s225 = smul.u32 3, %s19
        %v226 = vld [vmem:[%s223] sm:$0xff]
        %v227 = vld [vmem:[%s223 + $0x8] sm:$0xff]
        %v228 = vld [vmem:[%s223 + $0x10] sm:$0xff]
        %v229 = vld [vmem:[%s1] sm:$0xff]
        %v230 = vld [vmem:[%s1 + $0x8] sm:$0xff]
        %v231 = vld [vmem:[%s1 + $0x10] sm:$0xff]
        %v232 = vld [vmem:[%s1 + $0x18] sm:$0xff]
        %v233 = vld [vmem:[%s1 + $0x20] sm:$0xff]
        %v234 = vld [vmem:[%s1 + $0x28] sm:$0xff]
        %v235 = vld [vmem:[%s1 + $0x30] sm:$0xff]
        %v236 = vld [vmem:[%s1 + $0x38] sm:$0xff]
        %v237 = vld [vmem:[%s1 + $0x40] sm:$0xff]
        %v238 = vld [vmem:[%s1 + $0x48] sm:$0xff]
        %v239 = vld [vmem:[%s1 + $0x50] sm:$0xff]
        %v240 = vld [vmem:[%s1 + $0x58] sm:$0xff]
        %v241 = vld [vmem:[%s1 + $0x60] sm:$0xff]
        %v242 = vld [vmem:[%s1 + $0x68] sm:$0xff]
        %v243 = vld [vmem:[%s1 + $0x70] sm:$0xff]
        %v244 = vld [vmem:[%s1 + $0x78] sm:$0xff]
        %v245 = vld [vmem:[%s2] sm:$0x3]
        %v247 = vlaneseq
        %v248 = vshrl.u32 %v247, 7
        %v249 = vsub.s32 0, %v248
        %v250 = vrot.slane %v245, %v249
        %v251 = vlaneseq
        %v252 = vshrl.u32 %v251, 7
        %v253 = vsub.s32 1, %v252
        %v254 = vrot.slane %v245, %v253
        %vm257 = vcmask 523264
        %v259 = vsel %vm257, %v226, 0
        %v262 = vsel %vm257, %v227, 0
        %v265 = vsel %vm257, %v228, 0
        %267 = vmatprep.subr.mxu0 %v230
        %268 = vmatpush1.msra.mxu0 %v229
        %269 = vmatprep.subr.mxu0 %v232
        %270 = vmatpush1.msra.mxu0 %v231
        %271 = vmatprep.subr.mxu0 %v234
        %272 = vmatpush1.msra.mxu0 %v233
        %273 = vmatprep.subr.mxu0 %v236
        %274 = vmatpush1.msra.mxu0 %v235
        %275 = vmatprep.subr.mxu0 %v238
        %276 = vmatpush1.msra.mxu0 %v237
        %277 = vmatprep.subr.mxu0 %v240
        %278 = vmatpush1.msra.mxu0 %v239
        %279 = vmatprep.subr.mxu0 %v242
        %280 = vmatpush1.msra.mxu0 %v241
        %281 = vmatprep.subr.mxu0 %v244
        %282 = vmatpush1.msra.mxu0 %v243
        %283 = vmatprep.subr.mxu0 0.0
        %284 = vmatpush1.msra.mxu0 0.0
        %285 = vmatprep.subr.mxu0 0.0
        %286 = vmatpush1.msra.mxu0 0.0
        %287 = vmatprep.subr.mxu0 0.0
        %288 = vmatpush1.msra.mxu0 0.0
        %289 = vmatprep.subr.mxu0 0.0
        %290 = vmatpush1.msra.mxu0 0.0
        %291 = vmatprep.subr.mxu0 0.0
        %292 = vmatpush1.msra.mxu0 0.0
        %293 = vmatprep.subr.mxu0 0.0
        %294 = vmatpush1.msra.mxu0 0.0
        %295 = vmatprep.subr.mxu0 0.0
        %296 = vmatpush1.msra.mxu0 0.0
        %297 = vmatprep.subr.mxu0 0.0
        %298 = vmatpush1.msra.mxu0 0.0
        %299 = vmatprep.subr.mxu0 0.0
        %300 = vmatpush1.msra.mxu0 0.0
        %301 = vmatprep.subr.mxu0 0.0
        %302 = vmatpush1.msra.mxu0 0.0
        %303 = vmatprep.subr.mxu0 0.0
        %304 = vmatpush1.msra.mxu0 0.0
        %305 = vmatprep.subr.mxu0 0.0
        %306 = vmatpush1.msra.mxu0 0.0
        %307 = vmatprep.subr.mxu0 0.0
        %308 = vmatpush1.msra.mxu0 0.0
        %309 = vmatprep.subr.mxu0 0.0
        %310 = vmatpush1.msra.mxu0 0.0
        %311 = vmatprep.subr.mxu0 0.0
        %312 = vmatpush1.msra.mxu0 0.0
        %313 = vmatprep.subr.mxu0 0.0
        %314 = vmatpush1.msra.mxu0 0.0
        %315 = vmatprep.subr.mxu0 0.0
        %316 = vmatpush1.msra.mxu0 0.0
        %317 = vmatprep.subr.mxu0 0.0
        %318 = vmatpush1.msra.mxu0 0.0
        %319 = vmatprep.subr.mxu0 0.0
        %320 = vmatpush1.msra.mxu0 0.0
        %321 = vmatprep.subr.mxu0 0.0
        %322 = vmatpush1.msra.mxu0 0.0
        %323 = vmatprep.subr.mxu0 0.0
        %324 = vmatpush1.msra.mxu0 0.0
        %325 = vmatprep.subr.mxu0 0.0
        %326 = vmatpush1.msra.mxu0 0.0
        %327 = vmatprep.subr.mxu0 0.0
        %328 = vmatpush1.msra.mxu0 0.0
        %329 = vmatprep.subr.mxu0 0.0
        %330 = vmatpush1.msra.mxu0 0.0
        %331 = vmatprep.mubr.f32.mxu0 0.0
        %332 = vmatmul.mubr.f32.gmra.mrb[0].mxu0 %v259
        %v333 = vpop.f32.mrb[0].mxu0
        %v334 = vadd.f32 %v250, %v333
        %v335 = vpop.f32.mrb[0].mxu0
        %v336 = vadd.f32 %v254, %v335
        %337 = vmatprep.mubr.f32.mxu0 0.0
        %338 = vmatmul.mubr.f32.gmra.mrb[0].mxu0 %v262
        %v339 = vpop.f32.mrb[0].mxu0
        %v340 = vadd.f32 %v250, %v339
        %v341 = vpop.f32.mrb[0].mxu0
        %v342 = vadd.f32 %v254, %v341
        %343 = vmatprep.mubr.f32.mxu0 0.0
        %344 = vmatmul.mubr.f32.gmra.mrb[0].mxu0 %v265
        %v345 = vpop.f32.mrb[0].mxu0
        %v346 = vadd.f32 %v250, %v345
        %v347 = vpop.f32.mrb[0].mxu0
        %v348 = vadd.f32 %v254, %v347
        %349 = vdwg.mxu0
        %v350 = vmax.f32 %v334, 0.0
        %v351 = vmax.f32 %v336, 0.0
        %v352 = vmax.f32 %v340, 0.0
        %v353 = vmax.f32 %v342, 0.0
        %v354 = vmax.f32 %v346, 0.0
        %v355 = vmax.f32 %v348, 0.0
        %v356 = vld [vmem:[%s3] sm:$0xff]
        %v357 = vld [vmem:[%s3 + $0x8] sm:$0xff]
        %v358 = vld [vmem:[%s3 + $0x10] sm:$0xff]
        %v359 = vld [vmem:[%s3 + $0x18] sm:$0xff]
        %v360 = vld [vmem:[%s3 + $0x20] sm:$0xff]
        %v361 = vld [vmem:[%s3 + $0x28] sm:$0xff]
        %v362 = vld [vmem:[%s3 + $0x30] sm:$0xff]
        %v363 = vld [vmem:[%s3 + $0x38] sm:$0xff]
        %v364 = vld [vmem:[%s3 + $0x40] sm:$0xff]
        %v365 = vld [vmem:[%s3 + $0x48] sm:$0xff]
        %v366 = vld [vmem:[%s3 + $0x50] sm:$0xff]
        %v367 = vld [vmem:[%s3 + $0x58] sm:$0xff]
        %v368 = vld [vmem:[%s3 + $0x60] sm:$0xff]
        %v369 = vld [vmem:[%s3 + $0x68] sm:$0xff]
        %v370 = vld [vmem:[%s3 + $0x70] sm:$0xff]
        %v371 = vld [vmem:[%s3 + $0x78] sm:$0xff]
        %v372 = vld [vmem:[%s3 + $0x80] sm:$0xff]
        %v373 = vld [vmem:[%s3 + $0x88] sm:$0xff]
        %v374 = vld [vmem:[%s3 + $0x90] sm:$0xff]
        %v375 = vld [vmem:[%s3 + $0x98] sm:$0xff]
        %v376 = vld [vmem:[%s3 + $0xa0] sm:$0xff]
        %v377 = vld [vmem:[%s3 + $0xa8] sm:$0xff]
        %v378 = vld [vmem:[%s3 + $0xb0] sm:$0xff]
        %v379 = vld [vmem:[%s3 + $0xb8] sm:$0xff]
        %v380 = vld [vmem:[%s3 + $0xc0] sm:$0xff]
        %v381 = vld [vmem:[%s3 + $0xc8] sm:$0xff]
        %v382 = vld [vmem:[%s3 + $0xd0] sm:$0xff]
        %v383 = vld [vmem:[%s3 + $0xd8] sm:$0xff]
        %v384 = vld [vmem:[%s3 + $0xe0] sm:$0xff]
        %v385 = vld [vmem:[%s3 + $0xe8] sm:$0xff]
        %v386 = vld [vmem:[%s3 + $0xf0] sm:$0xff]
        %v387 = vld [vmem:[%s3 + $0xf8] sm:$0xff]
        %v388 = vld [vmem:[%s4] sm:$0x1]
        %v390 = vlaneseq
        %v391 = vshrl.u32 %v390, 7
        %v392 = vsub.s32 0, %v391
        %v393 = vrot.slane %v388, %v392
        %395 = vmatprep.subr.mxu0 0.0
        %396 = vmatpush1.msra.mxu0 %v356
        %397 = vmatprep.subr.mxu0 0.0
        %398 = vmatpush1.msra.mxu0 %v357
        %399 = vmatprep.subr.mxu0 0.0
        %400 = vmatpush1.msra.mxu0 %v358
        %401 = vmatprep.subr.mxu0 0.0
        %402 = vmatpush1.msra.mxu0 %v359
        %403 = vmatprep.subr.mxu0 0.0
        %404 = vmatpush1.msra.mxu0 %v360
        %405 = vmatprep.subr.mxu0 0.0
        %406 = vmatpush1.msra.mxu0 %v361
        %407 = vmatprep.subr.mxu0 0.0
        %408 = vmatpush1.msra.mxu0 %v362
        %409 = vmatprep.subr.mxu0 0.0
        %410 = vmatpush1.msra.mxu0 %v363
        %411 = vmatprep.subr.mxu0 0.0
        %412 = vmatpush1.msra.mxu0 %v364
        %413 = vmatprep.subr.mxu0 0.0
        %414 = vmatpush1.msra.mxu0 %v365
        %415 = vmatprep.subr.mxu0 0.0
        %416 = vmatpush1.msra.mxu0 %v366
        %417 = vmatprep.subr.mxu0 0.0
        %418 = vmatpush1.msra.mxu0 %v367
        %419 = vmatprep.subr.mxu0 0.0
        %420 = vmatpush1.msra.mxu0 %v368
        %421 = vmatprep.subr.mxu0 0.0
        %422 = vmatpush1.msra.mxu0 %v369
        %423 = vmatprep.subr.mxu0 0.0
        %424 = vmatpush1.msra.mxu0 %v370
        %425 = vmatprep.subr.mxu0 0.0
        %426 = vmatpush1.msra.mxu0 %v371
        %427 = vmatprep.subr.mxu0 0.0
        %428 = vmatpush1.msra.mxu0 %v372
        %429 = vmatprep.subr.mxu0 0.0
        %430 = vmatpush1.msra.mxu0 %v373
        %431 = vmatprep.subr.mxu0 0.0
        %432 = vmatpush1.msra.mxu0 %v374
        %433 = vmatprep.subr.mxu0 0.0
        %434 = vmatpush1.msra.mxu0 %v375
        %435 = vmatprep.subr.mxu0 0.0
        %436 = vmatpush1.msra.mxu0 %v376
        %437 = vmatprep.subr.mxu0 0.0
        %438 = vmatpush1.msra.mxu0 %v377
        %439 = vmatprep.subr.mxu0 0.0
        %440 = vmatpush1.msra.mxu0 %v378
        %441 = vmatprep.subr.mxu0 0.0
        %442 = vmatpush1.msra.mxu0 %v379
        %443 = vmatprep.subr.mxu0 0.0
        %444 = vmatpush1.msra.mxu0 %v380
        %445 = vmatprep.subr.mxu0 0.0
        %446 = vmatpush1.msra.mxu0 %v381
        %447 = vmatprep.subr.mxu0 0.0
        %448 = vmatpush1.msra.mxu0 %v382
        %449 = vmatprep.subr.mxu0 0.0
        %450 = vmatpush1.msra.mxu0 %v383
        %451 = vmatprep.subr.mxu0 0.0
        %452 = vmatpush1.msra.mxu0 %v384
        %453 = vmatprep.subr.mxu0 0.0
        %454 = vmatpush1.msra.mxu0 %v385
        %455 = vmatprep.subr.mxu0 0.0
        %456 = vmatpush1.msra.mxu0 %v386
        %457 = vmatprep.subr.mxu0 0.0
        %458 = vmatpush1.msra.mxu0 %v387
        %459 = vmatprep.mubr.f32.mxu0 %v351
        %460 = vmatmul.mubr.f32.gmra.mrb[0].mxu0 %v350
        %v461 = vpop.f32.mrb[0].mxu0
        %v462 = vadd.f32 %v393, %v461
        %v463 = vpop.f32.mrb[0].mxu0
        %464 = vmatprep.mubr.f32.mxu0 %v353
        %465 = vmatmul.mubr.f32.gmra.mrb[0].mxu0 %v352
        %v466 = vpop.f32.mrb[0].mxu0
        %v467 = vadd.f32 %v393, %v466
        %v468 = vpop.f32.mrb[0].mxu0
        %469 = vmatprep.mubr.f32.mxu0 %v355
        %470 = vmatmul.mubr.f32.gmra.mrb[0].mxu0 %v354
        %v471 = vpop.f32.mrb[0].mxu0
        %v472 = vadd.f32 %v393, %v471
        %v473 = vpop.f32.mrb[0].mxu0
        %474 = vdwg.mxu0
        %475 = vst [vmem:[%s218] sm:$0xff] %v462
        %476 = vst [vmem:[%s218 + $0x8] sm:$0xff] %v467
        %477 = vst [vmem:[%s218 + $0x10] sm:$0xff] %v472
        %s478 = sand.u32 %s137, 1
        %s479 = scalar_lea.sflag [#allocation3], %s478
        %s480 = sand.u32 %s137, 1
        %s481 = smul.addr %s480, 24
        %s482 = scalar_lea.vmem [#allocation2], %s481
        // Predicated region
        $region41: #{positionwise_ffn.1} parent=39 // pred_check
          %p483 = pneg %p147
        $region42: #{positionwise_ffn.1} parent=39 // pred_check_branch
          %485 = sbr.rel (%p483) target = $region44
        $region43: #{positionwise_ffn.1} parent=39 // pred_region
          %s486 = smul.u32 3, %s19
          %s488 = ssub.s32 384, 384
          %489 = vsyncadd %s479, %s488
          %s490 = smul.addr %s486, 128
          %s491 = scalar_lea.hbm %s5, %s490
          %s492 = sshll.u32 %s482, 4
          %s493 = int_to_ptr.vmem [resolvable:$true] %s492
          %498 = dma.vmem_to_hbm [thread:$0]  %s493, 384, %s491, %s479, 128, 128, 8
        $region44: #{positionwise_ffn.1} parent=39 // pred_fallthru
          _
      $region40: #{positionwise_ffn.1} parent=5 // pred_fallthru
        _
      %p499 = scmp.le.s32.totalorder 2, %s14
      // Predicated region
      $region45: #{positionwise_ffn.1} parent=5 // pred_check
        %p500 = pneg %p499
      $region46: #{positionwise_ffn.1} parent=5 // pred_check_branch
        %502 = sbr.rel (%p500) target = $region48
      $region47: #{positionwise_ffn.1} parent=5 // pred_region
        %s503 = ssub.s32 %s14, 2
        // Predicated region
        $region49: #{positionwise_ffn.1} parent=47 // pred_check
          %p504 = pneg %p153
        $region50: #{positionwise_ffn.1} parent=47 // pred_check_branch
          %506 = sbr.rel (%p504) target = $region52
        $region51: #{positionwise_ffn.1} parent=47 // pred_region
          %s507 = sand.u32 %s138, 1
          %s508 = scalar_lea.sflag [#allocation3], %s507
          %s509 = sand.u32 %s138, 1
          %s510 = smul.addr %s509, 24
          %s511 = scalar_lea.vmem [#allocation2], %s510
          %512 = dma.done %s508, 384
        $region52: #{positionwise_ffn.1} parent=47 // pred_fallthru
          _
      $region48: #{positionwise_ffn.1} parent=5 // pred_fallthru
        _
    $region6: #{positionwise_ffn.1} parent=1 // loop_footer
      %s18 = sadd.s32 1, %s14
    $region7: #{positionwise_ffn.1} parent=1 // loop_footer_branch
      %13 = sbr.rel target = $region3
    $region8: #{positionwise_ffn.1} parent=1 // loop_exit
      _
    %513 = vsyncpa [#allocation3], 1
    %s514 = scalar_lea.sflag [#allocation3], 1
    %515 = vsyncpa %s514, 1

</llo_original>
